<compile_context>
chip_gen: v6e
topology: v6e:2x2x1
jax: 0.10.0
libtpu: 0.0.40
codegen_flags: <defaults>
</compile_context>

<pallas_src>
import functools

import jax
import jax.numpy as jnp
from jax.experimental import pallas as pl
from jax.experimental.pallas import tpu as pltpu

_LANES = 128
_MAX_BLOCK_ROWS = 4096  # 4096x128 f32 = 2 MiB per input block


def _round_up(x, m):
    return ((x + m - 1) // m) * m


def _custom_loss_kernel(sim_ref, lab_ref, acc_ref, *, blk_r, bpc, rows):
    """Accumulate (pos_sq, total_sq, pos_cnt) partials into a (3, 8, 128) tile."""
    c = pl.program_id(0)
    i = pl.program_id(1)

    @pl.when(i == 0)
    def _init():
        acc_ref[...] = jnp.zeros_like(acc_ref)

    # Logical (UNCLAMPED) block index — used only for validity masking, so a
    # duplicated (clamped) DMA block on the last core contributes exactly zero.
    block_idx = c * bpc + i
    row0 = block_idx * blk_r
    row_ids = row0 + jax.lax.broadcasted_iota(jnp.int32, (blk_r, _LANES), 0)
    valid = row_ids < rows  # rows is a trace-time constant

    sim = jnp.where(valid, sim_ref[...], 0.0)
    # torch: positive iff label.bool()  ->  exact {0,1} indicator of (label != 0).
    p = jnp.where(jnp.logical_and(valid, lab_ref[...] != 0), 1.0, 0.0)

    diff = p - sim            # (1 - sim) on positives, (-sim) on negatives
    sq = diff * diff          # per-element squared error for BOTH classes
    pos_sq = p * sq

    # Partial-reduce the (blk_r, 128) block down to one (8, 128) vreg tile per
    # quantity: pure VALU adds across sublane-tile groups, no cross-lane work.
    g = blk_r // 8
    acc_ref[0] += jnp.sum(pos_sq.reshape(g, 8, _LANES), axis=0)
    acc_ref[1] += jnp.sum(sq.reshape(g, 8, _LANES), axis=0)
    acc_ref[2] += jnp.sum(p.reshape(g, 8, _LANES), axis=0)


@jax.jit
def custom_loss(similarity_score, label):
    """similarity_score: (N,) float; label: (N,) (0 = negative, nonzero = positive)."""
    n = similarity_score.shape[0]
    sim = similarity_score.astype(jnp.float32)
    lab = label.astype(jnp.float32)

    # Slab layout: rows of 128 lanes.  Pad only up to the next lane boundary
    # (and to at least one (8,128) tile); padded elements are (sim=0, label=0)
    # which contribute exactly 0 to every partial sum.  When N is already a
    # multiple of 128 (and >= 1024) this is a zero-copy reshape.
    rows = max(pl.cdiv(n, _LANES), 8)
    total = rows * _LANES
    if total != n:
        # TODO(synk): a fully ragged 1-D input path would avoid this tail-pad copy.
        sim = jnp.pad(sim, (0, total - n))
        lab = jnp.pad(lab, (0, total - n))
    sim2d = sim.reshape(rows, _LANES)
    lab2d = lab.reshape(rows, _LANES)

    blk_r = min(_MAX_BLOCK_ROWS, _round_up(rows, 8))
    n_blocks = pl.cdiv(rows, blk_r)
    # 2-way split of row-blocks for v7x megacore; on 1-TC chips (v5e/v6e) it is
    # just a serial loop and — thanks to in-kernel masking — adds no padding
    # (at most one duplicated, fully-masked tail block when n_blocks is odd).
    n_cores = 2 if n_blocks >= 2 else 1
    bpc = pl.cdiv(n_blocks, n_cores)

    def in_map(c, i):
        # Clamp the DMA block index; the kernel masks using the unclamped index,
        # so the duplicated tail block accumulates exactly zero.
        return (jnp.minimum(c * bpc + i, n_blocks - 1), 0)

    kernel = functools.partial(_custom_loss_kernel, blk_r=blk_r, bpc=bpc, rows=rows)

    acc = pl.pallas_call(
        kernel,
        out_shape=jax.ShapeDtypeStruct((n_cores, 3, 8, _LANES), jnp.float32),
        grid_spec=pltpu.PrefetchScalarGridSpec(
            num_scalar_prefetch=0,
            grid=(n_cores, bpc),
            in_specs=[
                pl.BlockSpec((blk_r, _LANES), in_map),
                pl.BlockSpec((blk_r, _LANES), in_map),
            ],
            out_specs=pl.BlockSpec((None, 3, 8, _LANES), lambda c, i: (c, 0, 0, 0)),
        ),
        compiler_params=pltpu.CompilerParams(
            dimension_semantics=("parallel", "arbitrary")),
    )(sim2d, lab2d)

    # Tiny final reduce (n_cores * 12 KiB) + exact divides (0/0 -> NaN matches
    # torch's mean over an empty selection).
    parts = jnp.sum(acc, axis=(0, 2, 3))  # (3,)
    pos_sum, tot_sum, pos_cnt = parts[0], parts[1], parts[2]
    neg_sum = tot_sum - pos_sum
    neg_cnt = jnp.float32(n) - pos_cnt
    return pos_sum / pos_cnt + neg_sum / neg_cnt


def _reference_loss(sim, lab):
    sim = sim.astype(jnp.float32)
    pos = lab != 0
    neg = ~pos
    pos_loss = jnp.sum(jnp.where(pos, (1.0 - sim) ** 2, 0.0)) / jnp.sum(pos)
    neg_loss = jnp.sum(jnp.where(neg, sim ** 2, 0.0)) / jnp.sum(neg)
    return pos_loss + neg_loss


if __name__ == "__main__":
    key = jax.random.PRNGKey(0)
    k_sim, k_lab, k_sim2, k_lab2 = jax.random.split(key, 4)

    # Small case consistent with the module's per-batch loss input.
    batch = 16
    similarity_score = jax.random.uniform(
        k_sim, (batch,), jnp.float32, minval=-1.0, maxval=1.0)
    label = jax.random.bernoulli(k_lab, 0.5, (batch,)).astype(jnp.float32)
    label = label.at[0].set(1.0).at[1].set(0.0)  # ensure both classes present

    loss = custom_loss(similarity_score, label)
    jax.block_until_ready(loss)
    ref = _reference_loss(similarity_score, label)
    assert jnp.allclose(loss, ref, atol=1e-5, rtol=1e-5), (loss, ref)

    # Larger ragged case: exercises the multi-block grid, the 2-way "parallel"
    # split, the clamped duplicate tail block, and in-kernel row masking.
    batch2 = 1_300_001
    sim2 = jax.random.uniform(k_sim2, (batch2,), jnp.float32, minval=-1.0, maxval=1.0)
    lab2 = jax.random.bernoulli(k_lab2, 0.3, (batch2,)).astype(jnp.float32)
    loss2 = custom_loss(sim2, lab2)
    jax.block_until_ready(loss2)
    ref2 = _reference_loss(sim2, lab2)
    assert jnp.allclose(loss2, ref2, atol=1e-4, rtol=1e-4), (loss2, ref2)

    print("KERNEL_OK")
</pallas_src>

<mosaic_0001>
module attributes {stable_mosaic.version = 11 : i64} {
  func.func @_custom_loss_kernel(%arg0: i32, %arg1: i32, %arg2: memref<8x128xf32, #tpu.memory_space<vmem>>, %arg3: memref<8x128xf32, #tpu.memory_space<vmem>>, %arg4: memref<1x3x8x128xf32, #tpu.memory_space<vmem>>) attributes {dimension_semantics = [#tpu.dimension_semantics<parallel>, #tpu.dimension_semantics<arbitrary>], iteration_bounds = array<i64: 1, 1>, scalar_prefetch = 0 : i64, scratch_operands = 0 : i64, tpu.core_type = #tpu.core_type<tc>, window_params = [{transform_indices = @transform_0, window_bounds = array<i64: 8, 128>}, {transform_indices = @transform_1, window_bounds = array<i64: 8, 128>}, {transform_indices = @transform_2, window_bounds = array<i64: 1, 3, 8, 128>}]} {
    %c0_i32 = arith.constant 0 : i32
    %0 = arith.cmpi eq, %arg1, %c0_i32 : i32
    %1 = arith.extui %0 : i1 to i32
    %c0_i32_0 = arith.constant 0 : i32
    %2 = arith.cmpi ne, %1, %c0_i32_0 : i32
    scf.if %2 {
      %cst_33 = arith.constant 0.000000e+00 : f32
      %48 = vector.broadcast %cst_33 : f32 to vector<3x8x128xf32>
      %c0_34 = arith.constant 0 : index
      %c0_35 = arith.constant 0 : index
      %c0_36 = arith.constant 0 : index
      %c0_37 = arith.constant 0 : index
      %49 = vector.load %arg4[%c0_34, %c0_35, %c0_36, %c0_37] : memref<1x3x8x128xf32, #tpu.memory_space<vmem>>, vector<1x3x8x128xf32>
      %50 = vector.shape_cast %49 : vector<1x3x8x128xf32> to vector<3x8x128xf32>
      %51 = vector.shape_cast %48 : vector<3x8x128xf32> to vector<1x3x8x128xf32>
      tpu.vector_store %arg4[%c0_34, %c0_35, %c0_36, %c0_37], %51 {strides = array<i32>} : memref<1x3x8x128xf32, #tpu.memory_space<vmem>>, vector<1x3x8x128xf32>,
    } else {
    }
    %c1_i32 = arith.constant 1 : i32
    %3 = arith.muli %arg0, %c1_i32 : i32
    %4 = arith.addi %3, %arg1 : i32
    %c8_i32 = arith.constant 8 : i32
    %5 = arith.muli %4, %c8_i32 : i32
    %6 = tpu.iota {dimensions = array<i32: 0>} : vector<8x128xi32>
    %7 = vector.broadcast %5 : i32 to vector<8x128xi32>
    %8 = arith.addi %7, %6 : vector<8x128xi32>
    %c8_i32_1 = arith.constant 8 : i32
    %9 = vector.broadcast %c8_i32_1 : i32 to vector<8x128xi32>
    %10 = arith.cmpi slt, %8, %9 : vector<8x128xi32>
    %c0 = arith.constant 0 : index
    %c0_2 = arith.constant 0 : index
    %11 = vector.load %arg2[%c0, %c0_2] : memref<8x128xf32, #tpu.memory_space<vmem>>, vector<8x128xf32>
    %cst = arith.constant 0.000000e+00 : f32
    %12 = vector.broadcast %cst : f32 to vector<8x128xf32>
    %13 = arith.select %10, %11, %12 : vector<8x128xi1>, vector<8x128xf32>
    %c0_3 = arith.constant 0 : index
    %c0_4 = arith.constant 0 : index
    %14 = vector.load %arg3[%c0_3, %c0_4] : memref<8x128xf32, #tpu.memory_space<vmem>>, vector<8x128xf32>
    %cst_5 = arith.constant 0.000000e+00 : f32
    %15 = vector.broadcast %cst_5 : f32 to vector<8x128xf32>
    %16 = arith.cmpf one, %14, %15 : vector<8x128xf32>
    %17 = arith.andi %10, %16 : vector<8x128xi1>
    %cst_6 = arith.constant 1.000000e+00 : f32
    %cst_7 = arith.constant 0.000000e+00 : f32
    %18 = vector.broadcast %cst_6 : f32 to vector<8x128xf32>
    %19 = vector.broadcast %cst_7 : f32 to vector<8x128xf32>
    %20 = arith.select %17, %18, %19 : vector<8x128xi1>, vector<8x128xf32>
    %21 = arith.subf %20, %13 : vector<8x128xf32>
    %22 = arith.mulf %21, %21 : vector<8x128xf32>
    %23 = arith.mulf %20, %22 : vector<8x128xf32>
    %c0_8 = arith.constant 0 : index
    %c0_9 = arith.constant 0 : index
    %c0_10 = arith.constant 0 : index
    %c0_11 = arith.constant 0 : index
    %24 = vector.load %arg4[%c0_8, %c0_9, %c0_10, %c0_11] : memref<1x3x8x128xf32, #tpu.memory_space<vmem>>, vector<1x1x8x128xf32>
    %25 = vector.shape_cast %24 : vector<1x1x8x128xf32> to vector<8x128xf32>
    %26 = vector.shape_cast %23 : vector<8x128xf32> to vector<1x8x128xf32>
    %cst_12 = arith.constant dense<0.000000e+00> : vector<8x128xf32>
    %27 = vector.multi_reduction <add>, %26, %cst_12 [0] : vector<1x8x128xf32> to vector<8x128xf32>
    %28 = arith.addf %25, %27 : vector<8x128xf32>
    %c0_13 = arith.constant 0 : index
    %c0_14 = arith.constant 0 : index
    %c0_15 = arith.constant 0 : index
    %c0_16 = arith.constant 0 : index
    %29 = vector.load %arg4[%c0_13, %c0_14, %c0_15, %c0_16] : memref<1x3x8x128xf32, #tpu.memory_space<vmem>>, vector<1x1x8x128xf32>
    %30 = vector.shape_cast %29 : vector<1x1x8x128xf32> to vector<8x128xf32>
    %31 = vector.shape_cast %28 : vector<8x128xf32> to vector<1x1x8x128xf32>
    tpu.vector_store %arg4[%c0_13, %c0_14, %c0_15, %c0_16], %31 {strides = array<i32>} : memref<1x3x8x128xf32, #tpu.memory_space<vmem>>, vector<1x1x8x128xf32>,
    %c0_17 = arith.constant 0 : index
    %c1 = arith.constant 1 : index
    %c0_18 = arith.constant 0 : index
    %c0_19 = arith.constant 0 : index
    %32 = vector.load %arg4[%c0_17, %c1, %c0_18, %c0_19] : memref<1x3x8x128xf32, #tpu.memory_space<vmem>>, vector<1x1x8x128xf32>
    %33 = vector.shape_cast %32 : vector<1x1x8x128xf32> to vector<8x128xf32>
    %34 = vector.shape_cast %22 : vector<8x128xf32> to vector<1x8x128xf32>
    %cst_20 = arith.constant dense<0.000000e+00> : vector<8x128xf32>
    %35 = vector.multi_reduction <add>, %34, %cst_20 [0] : vector<1x8x128xf32> to vector<8x128xf32>
    %36 = arith.addf %33, %35 : vector<8x128xf32>
    %c0_21 = arith.constant 0 : index
    %c1_22 = arith.constant 1 : index
    %c0_23 = arith.constant 0 : index
    %c0_24 = arith.constant 0 : index
    %37 = vector.load %arg4[%c0_21, %c1_22, %c0_23, %c0_24] : memref<1x3x8x128xf32, #tpu.memory_space<vmem>>, vector<1x1x8x128xf32>
    %38 = vector.shape_cast %37 : vector<1x1x8x128xf32> to vector<8x128xf32>
    %39 = vector.shape_cast %36 : vector<8x128xf32> to vector<1x1x8x128xf32>
    tpu.vector_store %arg4[%c0_21, %c1_22, %c0_23, %c0_24], %39 {strides = array<i32>} : memref<1x3x8x128xf32, #tpu.memory_space<vmem>>, vector<1x1x8x128xf32>,
    %c0_25 = arith.constant 0 : index
    %c2 = arith.constant 2 : index
    %c0_26 = arith.constant 0 : index
    %c0_27 = arith.constant 0 : index
    %40 = vector.load %arg4[%c0_25, %c2, %c0_26, %c0_27] : memref<1x3x8x128xf32, #tpu.memory_space<vmem>>, vector<1x1x8x128xf32>
    %41 = vector.shape_cast %40 : vector<1x1x8x128xf32> to vector<8x128xf32>
    %42 = vector.shape_cast %20 : vector<8x128xf32> to vector<1x8x128xf32>
    %cst_28 = arith.constant dense<0.000000e+00> : vector<8x128xf32>
    %43 = vector.multi_reduction <add>, %42, %cst_28 [0] : vector<1x8x128xf32> to vector<8x128xf32>
    %44 = arith.addf %41, %43 : vector<8x128xf32>
    %c0_29 = arith.constant 0 : index
    %c2_30 = arith.constant 2 : index
    %c0_31 = arith.constant 0 : index
    %c0_32 = arith.constant 0 : index
    %45 = vector.load %arg4[%c0_29, %c2_30, %c0_31, %c0_32] : memref<1x3x8x128xf32, #tpu.memory_space<vmem>>, vector<1x1x8x128xf32>
    %46 = vector.shape_cast %45 : vector<1x1x8x128xf32> to vector<8x128xf32>
    %47 = vector.shape_cast %44 : vector<8x128xf32> to vector<1x1x8x128xf32>
    tpu.vector_store %arg4[%c0_29, %c2_30, %c0_31, %c0_32], %47 {strides = array<i32>} : memref<1x3x8x128xf32, #tpu.memory_space<vmem>>, vector<1x1x8x128xf32>,
    return
  }
  func.func @transform_0(%arg0: i32, %arg1: i32) -> (i32, i32) {
    %c1_i32 = arith.constant 1 : i32
    %0 = arith.muli %arg0, %c1_i32 : i32
    %1 = arith.addi %0, %arg1 : i32
    %c0_i32 = arith.constant 0 : i32
    %2 = arith.minsi %1, %c0_i32 : i32
    %c0_i32_0 = arith.constant 0 : i32
    %c0_i32_1 = arith.constant 0 : i32
    return %2, %c0_i32_0 : i32, i32
  }
  func.func @transform_1(%arg0: i32, %arg1: i32) -> (i32, i32) {
    %c1_i32 = arith.constant 1 : i32
    %0 = arith.muli %arg0, %c1_i32 : i32
    %1 = arith.addi %0, %arg1 : i32
    %c0_i32 = arith.constant 0 : i32
    %2 = arith.minsi %1, %c0_i32 : i32
    %c0_i32_0 = arith.constant 0 : i32
    %c0_i32_1 = arith.constant 0 : i32
    return %2, %c0_i32_0 : i32, i32
  }
  func.func @transform_2(%arg0: i32, %arg1: i32) -> (i32, i32, i32, i32) {
    %c0_i32 = arith.constant 0 : i32
    %c0_i32_0 = arith.constant 0 : i32
    %c0_i32_1 = arith.constant 0 : i32
    %c0_i32_2 = arith.constant 0 : i32
    return %arg0, %c0_i32, %c0_i32_0, %c0_i32_1 : i32, i32, i32, i32
  }
}

</mosaic_0001>

<llo_original>
// kernel: custom_loss.1
$region0: #{custom_loss.1}
  #allocation0 [shape = 'u32[]', space=smem, size = 0x4, offset = 0x4, fixed_abs, tag = 'smem constant byte address 0x4 - core index']
  #allocation1 [shape = 'u32[144,128]{1,0:T(1,128)}', space=vmem, size = 0x12000, scoped, tag = 'internal scratch']
  %s0 = inlined_call_operand.vmem [shape: f32[8,128], index: 0, kind: input, shape index: {}]
  %s1 = inlined_call_operand.vmem [shape: f32[8,128], index: 1, kind: input, shape index: {}]
  %s2 = inlined_call_operand.vmem [shape: f32[1,3,8,128], index: 2, kind: output, shape index: {}]
  %s3 = sld [smem:[#allocation0]]
  $region22: #{custom_loss.1} parent=0
    _
  %s5 = ssub.s32 1, %s3
  %s6 = scalar_select 0, %s5, %s3
  // Predicated region
  $region2: #{custom_loss.1} parent=0 // pred_check
    _
  $region3: #{custom_loss.1} parent=0 // pred_check_branch
    %8 = sbr.rel (0) target = $region5
  $region4: #{custom_loss.1} parent=0 // pred_region
    %s9 = sadd.s32 0, 0
    %p10 = scmp.lt.s32.totalorder %s9, 0
    %s11 = scalar_select %p10, %s9, 0
    %p12 = scmp.lt.s32.totalorder %s11, 0
    %s13 = scalar_select %p12, %s11, 0
    %s14 = smul.addr %s13, 8
    %s15 = scalar_lea.vmem %s0, %s14
    %s16 = sadd.s32 0, 0
    %p17 = scmp.lt.s32.totalorder %s16, 0
    %s18 = scalar_select %p17, %s16, 0
  $region5: #{custom_loss.1} parent=0 // pred_fallthru
    _
  // Predicated region
  $region6: #{custom_loss.1} parent=0 // pred_check
    _
  $region7: #{custom_loss.1} parent=0 // pred_check_branch
    %20 = sbr.rel (0) target = $region9
  $region8: #{custom_loss.1} parent=0 // pred_region
    %s21 = sadd.s32 0, 0
    %p22 = scmp.lt.s32.totalorder %s21, 0
    %s23 = scalar_select %p22, %s21, 0
    %p24 = scmp.lt.s32.totalorder %s23, 0
    %s25 = scalar_select %p24, %s23, 0
    %s26 = smul.addr %s25, 8
    %s27 = scalar_lea.vmem %s1, %s26
    %s28 = sadd.s32 0, 0
    %p29 = scmp.lt.s32.totalorder %s28, 0
    %s30 = scalar_select %p29, %s28, 0
  $region9: #{custom_loss.1} parent=0 // pred_fallthru
    _
  %s31 = sadd.s32 0, 0
  %p32 = scmp.lt.s32.totalorder %s31, 0
  %s33 = scalar_select %p32, %s31, 0
  %p34 = scmp.lt.s32.totalorder %s33, 0
  %s35 = scalar_select %p34, %s33, 0
  %s36 = smul.addr %s35, 8
  %s37 = scalar_lea.vmem %s0, %s36
  %s38 = sadd.s32 0, 0
  %p39 = scmp.lt.s32.totalorder %s38, 0
  %s40 = scalar_select %p39, %s38, 0
  %p41 = scmp.lt.s32.totalorder %s40, 0
  %s42 = scalar_select %p41, %s40, 0
  %s43 = smul.addr %s42, 8
  %s44 = scalar_lea.vmem %s1, %s43
  %s45 = sadd.s32 0, 0
  %p46 = scmp.lt.s32.totalorder %s45, 0
  %s47 = scalar_select %p46, %s45, 0
  %p48 = scmp.lt.s32.totalorder %s47, 0
  %s49 = scalar_select %p48, %s47, 0
  %s50 = smul.addr %s49, 8
  %s51 = scalar_lea.vmem %s0, %s50
  %s52 = sadd.s32 0, 0
  %p53 = scmp.lt.s32.totalorder %s52, 0
  %s54 = scalar_select %p53, %s52, 0
  %s55 = sadd.s32 0, 0
  %p56 = scmp.lt.s32.totalorder %s55, 0
  %s57 = scalar_select %p56, %s55, 0
  %p58 = scmp.lt.s32.totalorder %s57, 0
  %s59 = scalar_select %p58, %s57, 0
  %s60 = smul.addr %s59, 8
  %s61 = scalar_lea.vmem %s1, %s60
  %s62 = sadd.s32 0, 0
  %p63 = scmp.lt.s32.totalorder %s62, 0
  %s64 = scalar_select %p63, %s62, 0
  %p65 = scmp.eq.s32.totalorder 0, 0
  // Predicated region
  $region10: #{custom_loss.1} parent=0 // pred_check
    %p66 = pneg %p65
  $region11: #{custom_loss.1} parent=0 // pred_check_branch
    %68 = sbr.rel (%p66) target = $region13
  $region12: #{custom_loss.1} parent=0 // pred_region
    %69 = vst [vmem:[%s2] sm:$0xff] 0.0
    %70 = vst [vmem:[%s2 + $0x8] sm:$0xff] 0.0
    %71 = vst [vmem:[%s2 + $0x10] sm:$0xff] 0.0
  $region13: #{custom_loss.1} parent=0 // pred_fallthru
    _
  %s72 = sadd.s32 0, 0
  %s73 = smul.u32 %s72, 8
  %v74 = vlaneseq
  %v75 = vshrl.u32 %v74, 7
  %v76 = vstv %s73
  %v77 = vadd.s32 %v76, %v75
  %vm78 = vcmp.lt.s32.totalorder %v77, 8
  %v79 = vld [vmem:[%s51] sm:$0xff]
  %v80 = vsel %vm78, %v79, 0.0
  %v81 = vld [vmem:[%s61] sm:$0xff]
  %vm82 = vcmp.ne.f32.partialorder %v81, 0.0
  %vm83 = vmand %vm78, %vm82
  %v84 = vsel %vm83, 1.0, 0.0
  %v85 = vsub.f32 %v84, %v80
  %v86 = vmul.f32 %v85, %v85
  %v87 = vmul.f32 %v84, %v86
  %v88 = vld [vmem:[%s2] sm:$0xff]
  %v89 = vadd.f32 %v87, 0.0
  %v90 = vadd.f32 %v88, %v89
  %91 = vst [vmem:[%s2] sm:$0xff] %v90
  %s92 = scalar_lea.vmem %s2, 8
  %v93 = vld [vmem:[%s92] sm:$0xff]
  %v94 = vadd.f32 %v86, 0.0
  %v95 = vadd.f32 %v93, %v94
  %96 = vst [vmem:[%s92] sm:$0xff] %v95
  %s97 = scalar_lea.vmem %s2, 16
  %v98 = vld [vmem:[%s97] sm:$0xff]
  %v99 = vadd.f32 %v84, 0.0
  %v100 = vadd.f32 %v98, %v99
  %101 = vst [vmem:[%s97] sm:$0xff] %v100
  // Predicated region
  $region14: #{custom_loss.1} parent=0 // pred_check
    _
  $region15: #{custom_loss.1} parent=0 // pred_check_branch
    %103 = sbr.rel (0) target = $region17
  $region16: #{custom_loss.1} parent=0 // pred_region
    _
  $region17: #{custom_loss.1} parent=0 // pred_fallthru
    _
  // Predicated region
  $region18: #{custom_loss.1} parent=0 // pred_check
    _
  $region19: #{custom_loss.1} parent=0 // pred_check_branch
    %105 = sbr.rel (0) target = $region21
  $region20: #{custom_loss.1} parent=0 // pred_region
    _
  $region21: #{custom_loss.1} parent=0 // pred_fallthru
    _

</llo_original>
